<compile_context>
chip_gen: v7x
topology: tpu7x:2x2x1
jax: 0.10.0
libtpu: 0.0.40
codegen_flags: <defaults>
</compile_context>

<pallas_src>
import jax
import jax.numpy as jnp
from jax.experimental import pallas as pl
from jax.experimental.pallas import tpu as pltpu

# Module hyper-parameters. Linear(12 * conv_out_channels, ...) forces
# (n_row - 3) * (n_col - 3) == 12, so pick a 6x7 board (classic Connect Four).
N_ROW, N_COL = 6, 7
C_OUT = 16
HIDDEN = 128
KH = KW = 4
H_OUT, W_OUT = N_ROW - KH + 1, N_COL - KW + 1   # 3, 4
P = H_OUT * W_OUT                               # 12
PATCH = P * KH * KW                             # 192 (per one-hot class)
HEAD_PAD = 128                                  # lane-dense padded head width


def _round_up(n, m):
    return ((n + m - 1) // m) * m


def convnet_kernel(patches_ref, wc0_ref, wc1_ref, wc2_ref, bf_ref,
                   wh_ref, bh_ref, out_ref):
    """One batch tile: fused (conv+Linear1) -> ReLU -> head -> Softsign."""
    x = patches_ref[...]                                   # (TB, 192) f32 raw windows
    # One-hot class planes, built as cheap VPU compares on lane-dense (TB,192)
    # tiles.  bf16 is exact for {0,1} so the MXU runs at its bf16 rate.
    eq0 = (x == 0.0).astype(jnp.bfloat16)
    eq1 = (x == 1.0).astype(jnp.bfloat16)
    eq2 = (x == 2.0).astype(jnp.bfloat16)
    # Folded conv+Linear1: (TB,576)@(576,128) split along K into its 3 class
    # planes, accumulated in f32.
    h = jnp.dot(eq0, wc0_ref[...], preferred_element_type=jnp.float32)
    h = h + jnp.dot(eq1, wc1_ref[...], preferred_element_type=jnp.float32)
    h = h + jnp.dot(eq2, wc2_ref[...], preferred_element_type=jnp.float32)
    h = h + bf_ref[...]                                    # fused bias (1,128)
    h = jnp.maximum(h, 0.0).astype(jnp.bfloat16)           # ReLU, bf16 for MXU
    # Head: (TB,128)@(128,128 lane-padded), f32 accumulate + padded bias.
    logits = jnp.dot(h, wh_ref[...],
                     preferred_element_type=jnp.float32) + bh_ref[...]
    out_ref[...] = logits / (1.0 + jnp.abs(logits))        # Softsign


def convnet_forward(x, params, *, tile_b=512):
    wc, cb, w1, b1, w2, b2 = params
    x = x.reshape(-1, N_ROW, N_COL).astype(jnp.float32)
    B = x.shape[0]

    # --- im2col glue (batch-major): column = p*16 + kh*4 + kw.
    patches = jnp.stack(
        [x[:, ho:ho + KH, wo:wo + KW].reshape(B, KH * KW)
         for ho in range(H_OUT) for wo in range(W_OUT)],
        axis=1).reshape(B, PATCH)

    # --- fold conv into Linear1 (no activation in between), wrapper glue.
    # conv[b,c,p] = cb[c] + sum_{ci,kh,kw} wc[c,ci,kh,kw]*onehot[b,ci,p,kh,kw]
    # h_pre[b,j]  = b1[j] + sum_{c,p} w1[j, c*P+p]*conv[b,c,p]
    w1_r = w1.reshape(HIDDEN, C_OUT, P)                           # [j, c, p]
    b_fold = (b1 + jnp.einsum('jcp,c->j', w1_r, cb)).reshape(1, HIDDEN)
    # w_fold[ci, p*16+kh*4+kw, j] = sum_c w1[j, c*P+p] * wc[c, ci, kh, kw]
    w_fold = jnp.einsum('jcp,cikl->ipklj', w1_r, wc).reshape(3, PATCH, HIDDEN)
    w_fold = w_fold.astype(jnp.bfloat16)

    # --- lane-dense head: zero-pad (HIDDEN, 7) -> (HIDDEN, 128).
    w_head = jnp.zeros((HIDDEN, HEAD_PAD), jnp.float32).at[:, :N_COL].set(w2.T)
    w_head = w_head.astype(jnp.bfloat16)
    b_head = jnp.zeros((1, HEAD_PAD), jnp.float32).at[:, :N_COL].set(b2)

    # --- batch tiling: pad B up to a multiple of the (sublane-aligned) tile.
    tb = max(8, min(tile_b, _round_up(B, 8)))
    b_pad = _round_up(B, tb)
    if b_pad != B:
        patches = jnp.pad(patches, ((0, b_pad - B), (0, 0)))
    grid = (b_pad // tb,)

    row_map = lambda i: (i, 0)      # streamed per batch tile
    wgt_map = lambda i: (0, 0)      # weights stay VMEM-resident

    out = pl.pallas_call(
        convnet_kernel,
        out_shape=jax.ShapeDtypeStruct((b_pad, HEAD_PAD), jnp.float32),
        grid=grid,
        in_specs=[
            pl.BlockSpec((tb, PATCH), row_map),          # patches
            pl.BlockSpec((PATCH, HIDDEN), wgt_map),      # folded weight, class 0
            pl.BlockSpec((PATCH, HIDDEN), wgt_map),      # folded weight, class 1
            pl.BlockSpec((PATCH, HIDDEN), wgt_map),      # folded weight, class 2
            pl.BlockSpec((1, HIDDEN), wgt_map),          # fused bias
            pl.BlockSpec((HIDDEN, HEAD_PAD), wgt_map),   # padded head weight
            pl.BlockSpec((1, HEAD_PAD), wgt_map),        # padded head bias
        ],
        out_specs=pl.BlockSpec((tb, HEAD_PAD), row_map),
        compiler_params=pltpu.CompilerParams(
            dimension_semantics=("parallel",)),          # v7x: 2 TCs split batch
    )(patches, w_fold[0], w_fold[1], w_fold[2], b_fold, w_head, b_head)

    return out[:B, :N_COL]


def convnet_ref(x, params):
    """Pure-JAX reference matching the PyTorch forward exactly (f32)."""
    wc, cb, w1, b1, w2, b2 = params
    x = x.reshape(-1, N_ROW, N_COL).astype(jnp.float32)
    oh = jnp.stack([(x == jnp.float32(i)).astype(jnp.float32) for i in range(3)],
                   axis=1)                                  # (B, 3, n_row, n_col)
    conv = jax.lax.conv_general_dilated(
        oh, wc, window_strides=(1, 1), padding="VALID",
        dimension_numbers=("NCHW", "OIHW", "NCHW")) + cb[None, :, None, None]
    flat = conv.reshape(x.shape[0], -1)
    h = jnp.maximum(flat @ w1.T + b1, 0.0)
    y = h @ w2.T + b2
    return y / (1.0 + jnp.abs(y))


def init_params(key):
    ks = jax.random.split(key, 6)
    wc = jax.random.uniform(ks[0], (C_OUT, 3, KH, KW), jnp.float32, -0.2, 0.2)
    cb = jax.random.uniform(ks[1], (C_OUT,), jnp.float32, -0.2, 0.2)
    w1 = jax.random.uniform(ks[2], (HIDDEN, P * C_OUT), jnp.float32, -0.1, 0.1)
    b1 = jax.random.uniform(ks[3], (HIDDEN,), jnp.float32, -0.1, 0.1)
    w2 = jax.random.uniform(ks[4], (N_COL, HIDDEN), jnp.float32, -0.1, 0.1)
    b2 = jax.random.uniform(ks[5], (N_COL,), jnp.float32, -0.1, 0.1)
    return wc, cb, w1, b1, w2, b2


if __name__ == "__main__":
    key = jax.random.PRNGKey(0)
    k_x, k_p = jax.random.split(key)
    B = 2
    # Board with values in {0, 1, 2} (empty / player 1 / player 2), as floats.
    x = jax.random.randint(k_x, (B, N_ROW, N_COL), 0, 3).astype(jnp.float32)
    params = init_params(k_p)

    out = convnet_forward(x, params)
    out = jax.block_until_ready(out)

    ref = convnet_ref(x, params)
    assert out.shape == (B, N_COL)
    # bf16 matmul operands (f32 accumulation): tolerance relaxed vs pure f32.
    assert jnp.allclose(out, ref, atol=3e-2, rtol=3e-2), (out, ref)
    print("KERNEL_OK")
</pallas_src>

<mosaic_0001>
module attributes {stable_mosaic.version = 11 : i64} {
  func.func @convnet_kernel(%arg0: i32, %arg1: memref<8x192xf32, #tpu.memory_space<vmem>>, %arg2: memref<192x128xbf16, #tpu.memory_space<vmem>>, %arg3: memref<192x128xbf16, #tpu.memory_space<vmem>>, %arg4: memref<192x128xbf16, #tpu.memory_space<vmem>>, %arg5: memref<1x128xf32, #tpu.memory_space<vmem>>, %arg6: memref<128x128xbf16, #tpu.memory_space<vmem>>, %arg7: memref<1x128xf32, #tpu.memory_space<vmem>>, %arg8: memref<8x128xf32, #tpu.memory_space<vmem>>) attributes {dimension_semantics = [#tpu.dimension_semantics<parallel>], iteration_bounds = array<i64: 1>, scalar_prefetch = 0 : i64, scratch_operands = 0 : i64, tpu.core_type = #tpu.core_type<tc>, window_params = [{transform_indices = @transform_0, window_bounds = array<i64: 8, 192>}, {pipeline_mode = #tpu.pipeline_mode<synchronous>, transform_indices = @transform_1, window_bounds = array<i64: 192, 128>}, {pipeline_mode = #tpu.pipeline_mode<synchronous>, transform_indices = @transform_2, window_bounds = array<i64: 192, 128>}, {pipeline_mode = #tpu.pipeline_mode<synchronous>, transform_indices = @transform_3, window_bounds = array<i64: 192, 128>}, {pipeline_mode = #tpu.pipeline_mode<synchronous>, transform_indices = @transform_4, window_bounds = array<i64: 1, 128>}, {pipeline_mode = #tpu.pipeline_mode<synchronous>, transform_indices = @transform_5, window_bounds = array<i64: 128, 128>}, {pipeline_mode = #tpu.pipeline_mode<synchronous>, transform_indices = @transform_6, window_bounds = array<i64: 1, 128>}, {transform_indices = @transform_7, window_bounds = array<i64: 8, 128>}]} {
    %c0 = arith.constant 0 : index
    %c0_0 = arith.constant 0 : index
    %0 = vector.load %arg1[%c0, %c0_0] : memref<8x192xf32, #tpu.memory_space<vmem>>, vector<8x192xf32>
    %cst = arith.constant 0.000000e+00 : f32
    %1 = vector.broadcast %cst : f32 to vector<8x192xf32>
    %2 = arith.cmpf oeq, %0, %1 : vector<8x192xf32>
    %3 = arith.extui %2 : vector<8x192xi1> to vector<8x192xi32>
    %4 = arith.sitofp %3 : vector<8x192xi32> to vector<8x192xf32>
    %5 = arith.truncf %4 : vector<8x192xf32> to vector<8x192xbf16>
    %cst_1 = arith.constant 1.000000e+00 : f32
    %6 = vector.broadcast %cst_1 : f32 to vector<8x192xf32>
    %7 = arith.cmpf oeq, %0, %6 : vector<8x192xf32>
    %8 = arith.extui %7 : vector<8x192xi1> to vector<8x192xi32>
    %9 = arith.sitofp %8 : vector<8x192xi32> to vector<8x192xf32>
    %10 = arith.truncf %9 : vector<8x192xf32> to vector<8x192xbf16>
    %cst_2 = arith.constant 2.000000e+00 : f32
    %11 = vector.broadcast %cst_2 : f32 to vector<8x192xf32>
    %12 = arith.cmpf oeq, %0, %11 : vector<8x192xf32>
    %13 = arith.extui %12 : vector<8x192xi1> to vector<8x192xi32>
    %14 = arith.sitofp %13 : vector<8x192xi32> to vector<8x192xf32>
    %15 = arith.truncf %14 : vector<8x192xf32> to vector<8x192xbf16>
    %c0_3 = arith.constant 0 : index
    %c0_4 = arith.constant 0 : index
    %16 = vector.load %arg2[%c0_3, %c0_4] : memref<192x128xbf16, #tpu.memory_space<vmem>>, vector<192x128xbf16>
    %cst_5 = arith.constant dense<0.000000e+00> : vector<8x128xf32>
    %17 = tpu.matmul %5, %16, %cst_5 {dimension_numbers = #tpu.dot_dimension_numbers<[1], [0], [0], [1], [0, 0, 1, 1], [], []>} : vector<8x192xbf16>, vector<192x128xbf16>, vector<8x128xf32> -> vector<8x128xf32>
    %c0_6 = arith.constant 0 : index
    %c0_7 = arith.constant 0 : index
    %18 = vector.load %arg3[%c0_6, %c0_7] : memref<192x128xbf16, #tpu.memory_space<vmem>>, vector<192x128xbf16>
    %cst_8 = arith.constant dense<0.000000e+00> : vector<8x128xf32>
    %19 = tpu.matmul %10, %18, %cst_8 {dimension_numbers = #tpu.dot_dimension_numbers<[1], [0], [0], [1], [0, 0, 1, 1], [], []>} : vector<8x192xbf16>, vector<192x128xbf16>, vector<8x128xf32> -> vector<8x128xf32>
    %20 = arith.addf %17, %19 : vector<8x128xf32>
    %c0_9 = arith.constant 0 : index
    %c0_10 = arith.constant 0 : index
    %21 = vector.load %arg4[%c0_9, %c0_10] : memref<192x128xbf16, #tpu.memory_space<vmem>>, vector<192x128xbf16>
    %cst_11 = arith.constant dense<0.000000e+00> : vector<8x128xf32>
    %22 = tpu.matmul %15, %21, %cst_11 {dimension_numbers = #tpu.dot_dimension_numbers<[1], [0], [0], [1], [0, 0, 1, 1], [], []>} : vector<8x192xbf16>, vector<192x128xbf16>, vector<8x128xf32> -> vector<8x128xf32>
    %23 = arith.addf %20, %22 : vector<8x128xf32>
    %c0_12 = arith.constant 0 : index
    %c0_13 = arith.constant 0 : index
    %24 = vector.load %arg5[%c0_12, %c0_13] : memref<1x128xf32, #tpu.memory_space<vmem>>, vector<1x128xf32>
    %25 = vector.broadcast %24 : vector<1x128xf32> to vector<8x128xf32>
    %26 = arith.addf %23, %25 : vector<8x128xf32>
    %cst_14 = arith.constant 0.000000e+00 : f32
    %27 = vector.broadcast %cst_14 : f32 to vector<8x128xf32>
    %28 = arith.maximumf %26, %27 : vector<8x128xf32>
    %29 = arith.truncf %28 : vector<8x128xf32> to vector<8x128xbf16>
    %c0_15 = arith.constant 0 : index
    %c0_16 = arith.constant 0 : index
    %30 = vector.load %arg6[%c0_15, %c0_16] : memref<128x128xbf16, #tpu.memory_space<vmem>>, vector<128x128xbf16>
    %cst_17 = arith.constant dense<0.000000e+00> : vector<8x128xf32>
    %31 = tpu.matmul %29, %30, %cst_17 {dimension_numbers = #tpu.dot_dimension_numbers<[1], [0], [0], [1], [0, 0, 1, 1], [], []>} : vector<8x128xbf16>, vector<128x128xbf16>, vector<8x128xf32> -> vector<8x128xf32>
    %c0_18 = arith.constant 0 : index
    %c0_19 = arith.constant 0 : index
    %32 = vector.load %arg7[%c0_18, %c0_19] : memref<1x128xf32, #tpu.memory_space<vmem>>, vector<1x128xf32>
    %33 = vector.broadcast %32 : vector<1x128xf32> to vector<8x128xf32>
    %34 = arith.addf %31, %33 : vector<8x128xf32>
    %35 = math.absf %34 : vector<8x128xf32>
    %cst_20 = arith.constant 1.000000e+00 : f32
    %36 = vector.broadcast %cst_20 : f32 to vector<8x128xf32>
    %37 = arith.addf %36, %35 : vector<8x128xf32>
    %38 = arith.divf %34, %37 : vector<8x128xf32>
    %c0_21 = arith.constant 0 : index
    %c0_22 = arith.constant 0 : index
    %39 = vector.load %arg8[%c0_21, %c0_22] : memref<8x128xf32, #tpu.memory_space<vmem>>, vector<8x128xf32>
    tpu.vector_store %arg8[%c0_21, %c0_22], %38 {strides = array<i32>} : memref<8x128xf32, #tpu.memory_space<vmem>>, vector<8x128xf32>,
    return
  }
  func.func @transform_0(%arg0: i32) -> (i32, i32) {
    %c0_i32 = arith.constant 0 : i32
    %c0_i32_0 = arith.constant 0 : i32
    return %arg0, %c0_i32 : i32, i32
  }
  func.func @transform_1(%arg0: i32) -> (i32, i32) {
    %c0_i32 = arith.constant 0 : i32
    %c0_i32_0 = arith.constant 0 : i32
    %c0_i32_1 = arith.constant 0 : i32
    return %c0_i32, %c0_i32_0 : i32, i32
  }
  func.func @transform_2(%arg0: i32) -> (i32, i32) {
    %c0_i32 = arith.constant 0 : i32
    %c0_i32_0 = arith.constant 0 : i32
    %c0_i32_1 = arith.constant 0 : i32
    return %c0_i32, %c0_i32_0 : i32, i32
  }
  func.func @transform_3(%arg0: i32) -> (i32, i32) {
    %c0_i32 = arith.constant 0 : i32
    %c0_i32_0 = arith.constant 0 : i32
    %c0_i32_1 = arith.constant 0 : i32
    return %c0_i32, %c0_i32_0 : i32, i32
  }
  func.func @transform_4(%arg0: i32) -> (i32, i32) {
    %c0_i32 = arith.constant 0 : i32
    %c0_i32_0 = arith.constant 0 : i32
    %c0_i32_1 = arith.constant 0 : i32
    return %c0_i32, %c0_i32_0 : i32, i32
  }
  func.func @transform_5(%arg0: i32) -> (i32, i32) {
    %c0_i32 = arith.constant 0 : i32
    %c0_i32_0 = arith.constant 0 : i32
    %c0_i32_1 = arith.constant 0 : i32
    return %c0_i32, %c0_i32_0 : i32, i32
  }
  func.func @transform_6(%arg0: i32) -> (i32, i32) {
    %c0_i32 = arith.constant 0 : i32
    %c0_i32_0 = arith.constant 0 : i32
    %c0_i32_1 = arith.constant 0 : i32
    return %c0_i32, %c0_i32_0 : i32, i32
  }
  func.func @transform_7(%arg0: i32) -> (i32, i32) {
    %c0_i32 = arith.constant 0 : i32
    %c0_i32_0 = arith.constant 0 : i32
    return %arg0, %c0_i32 : i32, i32
  }
}

</mosaic_0001>

<llo_original>
// kernel: tpu_custom_call.1
$region0: #{tpu_custom_call.1}
  #allocation0 [shape = 'u32[]', space=smem, size = 0x4, offset = 0x4, fixed_abs, tag = 'smem constant byte address 0x4 - core index']
  #allocation1 [shape = 'u32[144,128]{1,0:T(1,128)}', space=vmem, size = 0x12000, scoped, tag = 'internal scratch']
  %s0 = inlined_call_operand.hbm [shape: f32[8,192], index: 0, kind: input, shape index: {}]
  %s1 = inlined_call_operand.hbm [shape: bf16[192,128], index: 1, kind: input, shape index: {}]
  %s2 = inlined_call_operand.hbm [shape: bf16[192,128], index: 2, kind: input, shape index: {}]
  %s3 = inlined_call_operand.hbm [shape: bf16[192,128], index: 3, kind: input, shape index: {}]
  %s4 = inlined_call_operand.vmem [shape: f32[1,128], index: 4, kind: input, shape index: {}]
  %s5 = inlined_call_operand.hbm [shape: bf16[128,128], index: 5, kind: input, shape index: {}]
  %s6 = inlined_call_operand.vmem [shape: f32[1,128], index: 6, kind: input, shape index: {}]
  %s7 = inlined_call_operand.hbm [shape: f32[8,128], index: 7, kind: output, shape index: {}]
  %s8 = sld [smem:[#allocation0]]
  $region58: #{tpu_custom_call.1} parent=0
    _
  %s10 = ssub.s32 1, %s8
  %s11 = scalar_select 0, %s10, %s8
  $region1: #{tpu_custom_call.1} parent=0
    #allocation2 [shape = 'u8[8192]{0}', space=vmem, size = 0x2000, scoped, tag = 'input window, operand 0, single buffered']
    #allocation3 [shape = 's32[1]{0}', space=sflag, size = 0x4, scoped, tag = 'scoped memory for tpu_custom_call.1']
    #allocation4 [shape = 's32[1]{0}', space=sflag, size = 0x4, scoped, tag = 'scoped memory for tpu_custom_call.1']
    #allocation5 [shape = 'u8[49152]{0}', space=vmem, size = 0xc000, scoped, tag = 'input window, operand 1, single buffered']
    #allocation6 [shape = 's32[1]{0}', space=sflag, size = 0x4, scoped, tag = 'scoped memory for tpu_custom_call.1']
    #allocation7 [shape = 'u8[49152]{0}', space=vmem, size = 0xc000, scoped, tag = 'input window, operand 2, single buffered']
    #allocation8 [shape = 'u8[49152]{0}', space=vmem, size = 0xc000, scoped, tag = 'input window, operand 3, single buffered']
    #allocation9 [shape = 's32[1]{0}', space=sflag, size = 0x4, scoped, tag = 'scoped memory for tpu_custom_call.1']
    #allocation10 [shape = 'u8[32768]{0}', space=vmem, size = 0x8000, scoped, tag = 'input window, operand 5, single buffered']
    #allocation11 [shape = 'u8[4096]{0}', space=vmem, size = 0x1000, scoped, tag = 'output window, operand 0, single buffered']
    %12 = vsyncpa [#allocation3], 0
    %13 = vsyncpa [#allocation6], 0
    %14 = vsyncpa [#allocation9], 0
    %15 = vsyncpa [#allocation4], 0
    // Predicated region
    $region2: #{tpu_custom_call.1} parent=1 // pred_check
      _
    $region3: #{tpu_custom_call.1} parent=1 // pred_check_branch
      %17 = sbr.rel (0) target = $region5
    $region4: #{tpu_custom_call.1} parent=1 // pred_region
      %s19 = ssub.s32 256, 256
      %20 = vsyncadd [#allocation3], %s19
      %s22 = sshll.u32 [#allocation2], 4
      %s23 = int_to_ptr.vmem [resolvable:$true] %s22
      %25 = dma.hbm_to_vmem [thread:$0]  %s0, 256, %s23, [#allocation3]
    $region5: #{tpu_custom_call.1} parent=1 // pred_fallthru
      _
    // Predicated region
    $region6: #{tpu_custom_call.1} parent=1 // pred_check
      _
    $region7: #{tpu_custom_call.1} parent=1 // pred_check_branch
      %27 = sbr.rel (0) target = $region9
    $region8: #{tpu_custom_call.1} parent=1 // pred_region
      %s29 = ssub.s32 1536, 1536
      %30 = vsyncadd [#allocation6], %s29
      %s31 = sshll.u32 [#allocation5], 4
      %s32 = int_to_ptr.vmem [resolvable:$true] %s31
      %37 = dma.hbm_to_vmem [thread:$0]  %s1, 1536, %s32, [#allocation6], 64, 64, 4
    $region9: #{tpu_custom_call.1} parent=1 // pred_fallthru
      _
    // Predicated region
    $region10: #{tpu_custom_call.1} parent=1 // pred_check
      _
    $region11: #{tpu_custom_call.1} parent=1 // pred_check_branch
      %39 = sbr.rel (0) target = $region13
    $region12: #{tpu_custom_call.1} parent=1 // pred_region
      %s41 = ssub.s32 1536, 1536
      %42 = vsyncadd [#allocation6], %s41
      %s43 = sshll.u32 [#allocation7], 4
      %s44 = int_to_ptr.vmem [resolvable:$true] %s43
      %49 = dma.hbm_to_vmem [thread:$0]  %s2, 1536, %s44, [#allocation6], 64, 64, 4
    $region13: #{tpu_custom_call.1} parent=1 // pred_fallthru
      _
    // Predicated region
    $region14: #{tpu_custom_call.1} parent=1 // pred_check
      _
    $region15: #{tpu_custom_call.1} parent=1 // pred_check_branch
      %51 = sbr.rel (0) target = $region17
    $region16: #{tpu_custom_call.1} parent=1 // pred_region
      %s53 = ssub.s32 1536, 1536
      %54 = vsyncadd [#allocation9], %s53
      %s55 = sshll.u32 [#allocation8], 4
      %s56 = int_to_ptr.vmem [resolvable:$true] %s55
      %61 = dma.hbm_to_vmem [thread:$0]  %s3, 1536, %s56, [#allocation9], 64, 64, 4
    $region17: #{tpu_custom_call.1} parent=1 // pred_fallthru
      _
    // Predicated region
    $region18: #{tpu_custom_call.1} parent=1 // pred_check
      _
    $region19: #{tpu_custom_call.1} parent=1 // pred_check_branch
      %63 = sbr.rel (0) target = $region21
    $region20: #{tpu_custom_call.1} parent=1 // pred_region
      _
    $region21: #{tpu_custom_call.1} parent=1 // pred_fallthru
      _
    // Predicated region
    $region22: #{tpu_custom_call.1} parent=1 // pred_check
      _
    $region23: #{tpu_custom_call.1} parent=1 // pred_check_branch
      %65 = sbr.rel (0) target = $region25
    $region24: #{tpu_custom_call.1} parent=1 // pred_region
      %s67 = ssub.s32 1024, 1024
      %68 = vsyncadd [#allocation9], %s67
      %s69 = sshll.u32 [#allocation10], 4
      %s70 = int_to_ptr.vmem [resolvable:$true] %s69
      %75 = dma.hbm_to_vmem [thread:$0]  %s5, 1024, %s70, [#allocation9], 64, 64, 4
    $region25: #{tpu_custom_call.1} parent=1 // pred_fallthru
      _
    // Predicated region
    $region26: #{tpu_custom_call.1} parent=1 // pred_check
      _
    $region27: #{tpu_custom_call.1} parent=1 // pred_check_branch
      %77 = sbr.rel (0) target = $region29
    $region28: #{tpu_custom_call.1} parent=1 // pred_region
      _
    $region29: #{tpu_custom_call.1} parent=1 // pred_fallthru
      _
    // Predicated region
    $region30: #{tpu_custom_call.1} parent=1 // pred_check
      _
    $region31: #{tpu_custom_call.1} parent=1 // pred_check_branch
      %79 = sbr.rel (0) target = $region33
    $region32: #{tpu_custom_call.1} parent=1 // pred_region
      %80 = dma.done [#allocation3], 256
    $region33: #{tpu_custom_call.1} parent=1 // pred_fallthru
      _
    // Predicated region
    $region34: #{tpu_custom_call.1} parent=1 // pred_check
      _
    $region35: #{tpu_custom_call.1} parent=1 // pred_check_branch
      %82 = sbr.rel (0) target = $region37
    $region36: #{tpu_custom_call.1} parent=1 // pred_region
      %83 = dma.done [#allocation6], 1536
    $region37: #{tpu_custom_call.1} parent=1 // pred_fallthru
      _
    // Predicated region
    $region38: #{tpu_custom_call.1} parent=1 // pred_check
      _
    $region39: #{tpu_custom_call.1} parent=1 // pred_check_branch
      %85 = sbr.rel (0) target = $region41
    $region40: #{tpu_custom_call.1} parent=1 // pred_region
      %86 = dma.done [#allocation6], 1536
    $region41: #{tpu_custom_call.1} parent=1 // pred_fallthru
      _
    // Predicated region
    $region42: #{tpu_custom_call.1} parent=1 // pred_check
      _
    $region43: #{tpu_custom_call.1} parent=1 // pred_check_branch
      %88 = sbr.rel (0) target = $region45
    $region44: #{tpu_custom_call.1} parent=1 // pred_region
      %89 = dma.done [#allocation9], 1536
    $region45: #{tpu_custom_call.1} parent=1 // pred_fallthru
      _
    // Predicated region
    $region46: #{tpu_custom_call.1} parent=1 // pred_check
      _
    $region47: #{tpu_custom_call.1} parent=1 // pred_check_branch
      %91 = sbr.rel (0) target = $region49
    $region48: #{tpu_custom_call.1} parent=1 // pred_region
      %92 = dma.done [#allocation9], 1024
    $region49: #{tpu_custom_call.1} parent=1 // pred_fallthru
      _
    %v94 = vld [vmem:[#allocation2] sm:$0xff]
    %v95 = vld [vmem:[#allocation2 + $0x8] sm:$0xff]
    %vm96 = vcmp.eq.f32.partialorder %v94, 0.0
    %vm97 = vcmp.eq.f32.partialorder %v95, 0.0
    %v98 = vsel %vm96, 1, 0
    %v99 = vsel %vm97, 1, 0
    %v100 = vcvt.s32.f32 %v98
    %v101 = vcvt.s32.f32 %v99
    %v102 = vpack.c.bf16 %v100, %v100
    %v103 = vpack.c.bf16 %v101, %v101
    %vm104 = vcmp.eq.f32.partialorder %v94, 1.0
    %vm105 = vcmp.eq.f32.partialorder %v95, 1.0
    %v106 = vsel %vm104, 1, 0
    %v107 = vsel %vm105, 1, 0
    %v108 = vcvt.s32.f32 %v106
    %v109 = vcvt.s32.f32 %v107
    %v110 = vpack.c.bf16 %v108, %v108
    %v111 = vpack.c.bf16 %v109, %v109
    %vm112 = vcmp.eq.f32.partialorder %v94, 2.0
    %vm113 = vcmp.eq.f32.partialorder %v95, 2.0
    %v114 = vsel %vm112, 1, 0
    %v115 = vsel %vm113, 1, 0
    %v116 = vcvt.s32.f32 %v114
    %v117 = vcvt.s32.f32 %v115
    %v118 = vpack.c.bf16 %v116, %v116
    %v119 = vpack.c.bf16 %v117, %v117
    %v120 = vld [vmem:[#allocation5] sm:$0xf]
    %v121 = vld [vmem:[#allocation5 + $0x4] sm:$0xf]
    %v122 = vld [vmem:[#allocation5 + $0x8] sm:$0xf]
    %v123 = vld [vmem:[#allocation5 + $0xc] sm:$0xf]
    %v124 = vld [vmem:[#allocation5 + $0x10] sm:$0xf]
    %v125 = vld [vmem:[#allocation5 + $0x14] sm:$0xf]
    %v126 = vld [vmem:[#allocation5 + $0x18] sm:$0xf]
    %v127 = vld [vmem:[#allocation5 + $0x1c] sm:$0xf]
    %v128 = vld [vmem:[#allocation5 + $0x20] sm:$0xf]
    %v129 = vld [vmem:[#allocation5 + $0x24] sm:$0xf]
    %v130 = vld [vmem:[#allocation5 + $0x28] sm:$0xf]
    %v131 = vld [vmem:[#allocation5 + $0x2c] sm:$0xf]
    %v132 = vld [vmem:[#allocation5 + $0x30] sm:$0xf]
    %v133 = vld [vmem:[#allocation5 + $0x34] sm:$0xf]
    %v134 = vld [vmem:[#allocation5 + $0x38] sm:$0xf]
    %v135 = vld [vmem:[#allocation5 + $0x3c] sm:$0xf]
    %v136 = vld [vmem:[#allocation5 + $0x40] sm:$0xf]
    %v137 = vld [vmem:[#allocation5 + $0x44] sm:$0xf]
    %v138 = vld [vmem:[#allocation5 + $0x48] sm:$0xf]
    %v139 = vld [vmem:[#allocation5 + $0x4c] sm:$0xf]
    %v140 = vld [vmem:[#allocation5 + $0x50] sm:$0xf]
    %v141 = vld [vmem:[#allocation5 + $0x54] sm:$0xf]
    %v142 = vld [vmem:[#allocation5 + $0x58] sm:$0xf]
    %v143 = vld [vmem:[#allocation5 + $0x5c] sm:$0xf]
    %v144 = vld [vmem:[#allocation7] sm:$0xf]
    %v145 = vld [vmem:[#allocation7 + $0x4] sm:$0xf]
    %v146 = vld [vmem:[#allocation7 + $0x8] sm:$0xf]
    %v147 = vld [vmem:[#allocation7 + $0xc] sm:$0xf]
    %v148 = vld [vmem:[#allocation7 + $0x10] sm:$0xf]
    %v149 = vld [vmem:[#allocation7 + $0x14] sm:$0xf]
    %v150 = vld [vmem:[#allocation7 + $0x18] sm:$0xf]
    %v151 = vld [vmem:[#allocation7 + $0x1c] sm:$0xf]
    %v152 = vld [vmem:[#allocation7 + $0x20] sm:$0xf]
    %v153 = vld [vmem:[#allocation7 + $0x24] sm:$0xf]
    %v154 = vld [vmem:[#allocation7 + $0x28] sm:$0xf]
    %v155 = vld [vmem:[#allocation7 + $0x2c] sm:$0xf]
    %v156 = vld [vmem:[#allocation7 + $0x30] sm:$0xf]
    %v157 = vld [vmem:[#allocation7 + $0x34] sm:$0xf]
    %v158 = vld [vmem:[#allocation7 + $0x38] sm:$0xf]
    %v159 = vld [vmem:[#allocation7 + $0x3c] sm:$0xf]
    %v160 = vld [vmem:[#allocation7 + $0x40] sm:$0xf]
    %v161 = vld [vmem:[#allocation7 + $0x44] sm:$0xf]
    %v162 = vld [vmem:[#allocation7 + $0x48] sm:$0xf]
    %v163 = vld [vmem:[#allocation7 + $0x4c] sm:$0xf]
    %v164 = vld [vmem:[#allocation7 + $0x50] sm:$0xf]
    %v165 = vld [vmem:[#allocation7 + $0x54] sm:$0xf]
    %v166 = vld [vmem:[#allocation7 + $0x58] sm:$0xf]
    %v167 = vld [vmem:[#allocation7 + $0x5c] sm:$0xf]
    %v192 = vunpack.c.l.b16 %v144
    %v193 = vunpack.c.l.b16 %v145
    %v194 = vunpack.c.l.b16 %v146
    %v195 = vunpack.c.l.b16 %v147
    %v196 = vunpack.c.l.b16 %v148
    %v197 = vunpack.c.l.b16 %v149
    %v198 = vunpack.c.l.b16 %v150
    %v199 = vunpack.c.l.b16 %v151
    %v200 = vunpack.c.l.b16 %v152
    %v201 = vunpack.c.l.b16 %v153
    %v202 = vunpack.c.l.b16 %v154
    %v203 = vunpack.c.l.b16 %v155
    %v204 = vunpack.c.l.b16 %v156
    %v205 = vunpack.c.l.b16 %v157
    %v206 = vunpack.c.l.b16 %v158
    %v207 = vunpack.c.l.b16 %v159
    %v208 = vunpack.c.l.b16 %v160
    %v209 = vunpack.c.l.b16 %v161
    %v210 = vunpack.c.l.b16 %v162
    %v211 = vunpack.c.l.b16 %v163
    %v212 = vunpack.c.l.b16 %v164
    %v213 = vunpack.c.l.b16 %v165
    %v214 = vunpack.c.l.b16 %v166
    %v215 = vunpack.c.l.b16 %v167
    %v216 = vpack.c.b16 %v193, %v192
    %v217 = vpack.c.b16 %v195, %v194
    %v218 = vpack.c.b16 %v197, %v196
    %v219 = vpack.c.b16 %v199, %v198
    %v220 = vpack.c.b16 %v201, %v200
    %v221 = vpack.c.b16 %v203, %v202
    %v222 = vpack.c.b16 %v205, %v204
    %v223 = vpack.c.b16 %v207, %v206
    %v224 = vpack.c.b16 %v209, %v208
    %v225 = vpack.c.b16 %v211, %v210
    %v226 = vpack.c.b16 %v213, %v212
    %v227 = vpack.c.b16 %v215, %v214
    %vm240 = vcmask 523264
    %v242 = vsel %vm240, %v111, 0
    %244 = vmatprep.subr.bf16.mxu0 0
    %245 = vmatpush1.bf16.msra.mxu0 %v216
    %246 = vmatprep.subr.bf16.mxu0 0
    %247 = vmatpush1.bf16.msra.mxu0 %v217
    %248 = vmatprep.subr.bf16.mxu0 0
    %249 = vmatpush1.bf16.msra.mxu0 %v218
    %250 = vmatprep.subr.bf16.mxu0 0
    %251 = vmatpush1.bf16.msra.mxu0 %v219
    %252 = vmatprep.subr.bf16.mxu0 0
    %253 = vmatpush1.bf16.msra.mxu0 %v220
    %254 = vmatprep.subr.bf16.mxu0 0
    %255 = vmatpush1.bf16.msra.mxu0 %v221
    %256 = vmatprep.subr.bf16.mxu0 0
    %257 = vmatpush1.bf16.msra.mxu0 %v222
    %258 = vmatprep.subr.bf16.mxu0 0
    %259 = vmatpush1.bf16.msra.mxu0 %v223
    %260 = vmatprep.subr.bf16.mxu0 0
    %261 = vmatpush1.bf16.msra.mxu0 %v224
    %262 = vmatprep.subr.bf16.mxu0 0
    %263 = vmatpush1.bf16.msra.mxu0 %v225
    %264 = vmatprep.subr.bf16.mxu0 0
    %265 = vmatpush1.bf16.msra.mxu0 %v226
    %266 = vmatprep.subr.bf16.mxu0 0
    %267 = vmatpush1.bf16.msra.mxu0 %v227
    %268 = vmatprep.subr.bf16.mxu0 0
    %269 = vmatpush1.bf16.msra.mxu0 0
    %270 = vmatprep.subr.bf16.mxu0 0
    %271 = vmatpush1.bf16.msra.mxu0 0
    %272 = vmatprep.subr.bf16.mxu0 0
    %273 = vmatpush1.bf16.msra.mxu0 0
    %274 = vmatprep.subr.bf16.mxu0 0
    %275 = vmatpush1.bf16.msra.mxu0 0
    %276 = vmatprep.mubr.bf16.mxu0 %v242
    %277 = vmatmul.mubr.bf16.gmra.mrb[0].mxu0 %v110
    %v278 = vpop.f32.mrb[0].mxu0
    %v279 = vadd.f32 0.0, %v278
    %v280 = vpop.f32.mrb[0].mxu0
    %v281 = vpop.f32.mrb[0].mxu0
    %v282 = vpop.f32.mrb[0].mxu0
    %283 = vdwg.mxu0
    %v308 = vunpack.c.l.b16 %v120
    %v309 = vunpack.c.l.b16 %v121
    %v310 = vunpack.c.l.b16 %v122
    %v311 = vunpack.c.l.b16 %v123
    %v312 = vunpack.c.l.b16 %v124
    %v313 = vunpack.c.l.b16 %v125
    %v314 = vunpack.c.l.b16 %v126
    %v315 = vunpack.c.l.b16 %v127
    %v316 = vunpack.c.l.b16 %v128
    %v317 = vunpack.c.l.b16 %v129
    %v318 = vunpack.c.l.b16 %v130
    %v319 = vunpack.c.l.b16 %v131
    %v320 = vunpack.c.l.b16 %v132
    %v321 = vunpack.c.l.b16 %v133
    %v322 = vunpack.c.l.b16 %v134
    %v323 = vunpack.c.l.b16 %v135
    %v324 = vunpack.c.l.b16 %v136
    %v325 = vunpack.c.l.b16 %v137
    %v326 = vunpack.c.l.b16 %v138
    %v327 = vunpack.c.l.b16 %v139
    %v328 = vunpack.c.l.b16 %v140
    %v329 = vunpack.c.l.b16 %v141
    %v330 = vunpack.c.l.b16 %v142
    %v331 = vunpack.c.l.b16 %v143
    %v332 = vpack.c.b16 %v309, %v308
    %v333 = vpack.c.b16 %v311, %v310
    %v334 = vpack.c.b16 %v313, %v312
    %v335 = vpack.c.b16 %v315, %v314
    %v336 = vpack.c.b16 %v317, %v316
    %v337 = vpack.c.b16 %v319, %v318
    %v338 = vpack.c.b16 %v321, %v320
    %v339 = vpack.c.b16 %v323, %v322
    %v340 = vpack.c.b16 %v325, %v324
    %v341 = vpack.c.b16 %v327, %v326
    %v342 = vpack.c.b16 %v329, %v328
    %v343 = vpack.c.b16 %v331, %v330
    %v357 = vsel %vm240, %v103, 0
    %359 = vmatprep.subr.bf16.mxu0 0
    %360 = vmatpush1.bf16.msra.mxu0 %v332
    %361 = vmatprep.subr.bf16.mxu0 0
    %362 = vmatpush1.bf16.msra.mxu0 %v333
    %363 = vmatprep.subr.bf16.mxu0 0
    %364 = vmatpush1.bf16.msra.mxu0 %v334
    %365 = vmatprep.subr.bf16.mxu0 0
    %366 = vmatpush1.bf16.msra.mxu0 %v335
    %367 = vmatprep.subr.bf16.mxu0 0
    %368 = vmatpush1.bf16.msra.mxu0 %v336
    %369 = vmatprep.subr.bf16.mxu0 0
    %370 = vmatpush1.bf16.msra.mxu0 %v337
    %371 = vmatprep.subr.bf16.mxu0 0
    %372 = vmatpush1.bf16.msra.mxu0 %v338
    %373 = vmatprep.subr.bf16.mxu0 0
    %374 = vmatpush1.bf16.msra.mxu0 %v339
    %375 = vmatprep.subr.bf16.mxu0 0
    %376 = vmatpush1.bf16.msra.mxu0 %v340
    %377 = vmatprep.subr.bf16.mxu0 0
    %378 = vmatpush1.bf16.msra.mxu0 %v341
    %379 = vmatprep.subr.bf16.mxu0 0
    %380 = vmatpush1.bf16.msra.mxu0 %v342
    %381 = vmatprep.subr.bf16.mxu0 0
    %382 = vmatpush1.bf16.msra.mxu0 %v343
    %383 = vmatprep.subr.bf16.mxu0 0
    %384 = vmatpush1.bf16.msra.mxu0 0
    %385 = vmatprep.subr.bf16.mxu0 0
    %386 = vmatpush1.bf16.msra.mxu0 0
    %387 = vmatprep.subr.bf16.mxu0 0
    %388 = vmatpush1.bf16.msra.mxu0 0
    %389 = vmatprep.subr.bf16.mxu0 0
    %390 = vmatpush1.bf16.msra.mxu0 0
    %391 = vmatprep.mubr.bf16.mxu0 %v357
    %392 = vmatmul.mubr.bf16.gmra.mrb[0].mxu0 %v102
    %v393 = vpop.f32.mrb[0].mxu0
    %v394 = vadd.f32 %v279, %v393
    %v395 = vpop.f32.mrb[0].mxu0
    %v396 = vpop.f32.mrb[0].mxu0
    %v397 = vpop.f32.mrb[0].mxu0
    %398 = vdwg.mxu0
    %v399 = vld [vmem:[#allocation8] sm:$0xf]
    %v400 = vld [vmem:[#allocation8 + $0x4] sm:$0xf]
    %v401 = vld [vmem:[#allocation8 + $0x8] sm:$0xf]
    %v402 = vld [vmem:[#allocation8 + $0xc] sm:$0xf]
    %v403 = vld [vmem:[#allocation8 + $0x10] sm:$0xf]
    %v404 = vld [vmem:[#allocation8 + $0x14] sm:$0xf]
    %v405 = vld [vmem:[#allocation8 + $0x18] sm:$0xf]
    %v406 = vld [vmem:[#allocation8 + $0x1c] sm:$0xf]
    %v407 = vld [vmem:[#allocation8 + $0x20] sm:$0xf]
    %v408 = vld [vmem:[#allocation8 + $0x24] sm:$0xf]
    %v409 = vld [vmem:[#allocation8 + $0x28] sm:$0xf]
    %v410 = vld [vmem:[#allocation8 + $0x2c] sm:$0xf]
    %v411 = vld [vmem:[#allocation8 + $0x30] sm:$0xf]
    %v412 = vld [vmem:[#allocation8 + $0x34] sm:$0xf]
    %v413 = vld [vmem:[#allocation8 + $0x38] sm:$0xf]
    %v414 = vld [vmem:[#allocation8 + $0x3c] sm:$0xf]
    %v415 = vld [vmem:[#allocation8 + $0x40] sm:$0xf]
    %v416 = vld [vmem:[#allocation8 + $0x44] sm:$0xf]
    %v417 = vld [vmem:[#allocation8 + $0x48] sm:$0xf]
    %v418 = vld [vmem:[#allocation8 + $0x4c] sm:$0xf]
    %v419 = vld [vmem:[#allocation8 + $0x50] sm:$0xf]
    %v420 = vld [vmem:[#allocation8 + $0x54] sm:$0xf]
    %v421 = vld [vmem:[#allocation8 + $0x58] sm:$0xf]
    %v422 = vld [vmem:[#allocation8 + $0x5c] sm:$0xf]
    %v447 = vunpack.c.l.b16 %v399
    %v448 = vunpack.c.l.b16 %v400
    %v449 = vunpack.c.l.b16 %v401
    %v450 = vunpack.c.l.b16 %v402
    %v451 = vunpack.c.l.b16 %v403
    %v452 = vunpack.c.l.b16 %v404
    %v453 = vunpack.c.l.b16 %v405
    %v454 = vunpack.c.l.b16 %v406
    %v455 = vunpack.c.l.b16 %v407
    %v456 = vunpack.c.l.b16 %v408
    %v457 = vunpack.c.l.b16 %v409
    %v458 = vunpack.c.l.b16 %v410
    %v459 = vunpack.c.l.b16 %v411
    %v460 = vunpack.c.l.b16 %v412
    %v461 = vunpack.c.l.b16 %v413
    %v462 = vunpack.c.l.b16 %v414
    %v463 = vunpack.c.l.b16 %v415
    %v464 = vunpack.c.l.b16 %v416
    %v465 = vunpack.c.l.b16 %v417
    %v466 = vunpack.c.l.b16 %v418
    %v467 = vunpack.c.l.b16 %v419
    %v468 = vunpack.c.l.b16 %v420
    %v469 = vunpack.c.l.b16 %v421
    %v470 = vunpack.c.l.b16 %v422
    %v471 = vpack.c.b16 %v448, %v447
    %v472 = vpack.c.b16 %v450, %v449
    %v473 = vpack.c.b16 %v452, %v451
    %v474 = vpack.c.b16 %v454, %v453
    %v475 = vpack.c.b16 %v456, %v455
    %v476 = vpack.c.b16 %v458, %v457
    %v477 = vpack.c.b16 %v460, %v459
    %v478 = vpack.c.b16 %v462, %v461
    %v479 = vpack.c.b16 %v464, %v463
    %v480 = vpack.c.b16 %v466, %v465
    %v481 = vpack.c.b16 %v468, %v467
    %v482 = vpack.c.b16 %v470, %v469
    %v496 = vsel %vm240, %v119, 0
    %498 = vmatprep.subr.bf16.mxu0 0
    %499 = vmatpush1.bf16.msra.mxu0 %v471
    %500 = vmatprep.subr.bf16.mxu0 0
    %501 = vmatpush1.bf16.msra.mxu0 %v472
    %502 = vmatprep.subr.bf16.mxu0 0
    %503 = vmatpush1.bf16.msra.mxu0 %v473
    %504 = vmatprep.subr.bf16.mxu0 0
    %505 = vmatpush1.bf16.msra.mxu0 %v474
    %506 = vmatprep.subr.bf16.mxu0 0
    %507 = vmatpush1.bf16.msra.mxu0 %v475
    %508 = vmatprep.subr.bf16.mxu0 0
    %509 = vmatpush1.bf16.msra.mxu0 %v476
    %510 = vmatprep.subr.bf16.mxu0 0
    %511 = vmatpush1.bf16.msra.mxu0 %v477
    %512 = vmatprep.subr.bf16.mxu0 0
    %513 = vmatpush1.bf16.msra.mxu0 %v478
    %514 = vmatprep.subr.bf16.mxu0 0
    %515 = vmatpush1.bf16.msra.mxu0 %v479
    %516 = vmatprep.subr.bf16.mxu0 0
    %517 = vmatpush1.bf16.msra.mxu0 %v480
    %518 = vmatprep.subr.bf16.mxu0 0
    %519 = vmatpush1.bf16.msra.mxu0 %v481
    %520 = vmatprep.subr.bf16.mxu0 0
    %521 = vmatpush1.bf16.msra.mxu0 %v482
    %522 = vmatprep.subr.bf16.mxu0 0
    %523 = vmatpush1.bf16.msra.mxu0 0
    %524 = vmatprep.subr.bf16.mxu0 0
    %525 = vmatpush1.bf16.msra.mxu0 0
    %526 = vmatprep.subr.bf16.mxu0 0
    %527 = vmatpush1.bf16.msra.mxu0 0
    %528 = vmatprep.subr.bf16.mxu0 0
    %529 = vmatpush1.bf16.msra.mxu0 0
    %530 = vmatprep.mubr.bf16.mxu0 %v496
    %531 = vmatmul.mubr.bf16.gmra.mrb[0].mxu0 %v118
    %v532 = vpop.f32.mrb[0].mxu0
    %v533 = vadd.f32 0.0, %v532
    %v534 = vpop.f32.mrb[0].mxu0
    %v535 = vpop.f32.mrb[0].mxu0
    %v536 = vpop.f32.mrb[0].mxu0
    %537 = vdwg.mxu0
    %v538 = vadd.f32 %v394, %v533
    %v539 = vld [vmem:[%s4] sm:$0x1]
    %v541 = vlaneseq
    %v542 = vshrl.u32 %v541, 7
    %v543 = vsub.s32 0, %v542
    %v544 = vrot.slane %v539, %v543
    %v546 = vadd.f32 %v538, %v544
    %v547 = vmax.f32 %v546, 0.0
    %v548 = vpack.c.bf16 %v547, %v547
    %v549 = vld [vmem:[#allocation10] sm:$0xf]
    %v550 = vld [vmem:[#allocation10 + $0x4] sm:$0xf]
    %v551 = vld [vmem:[#allocation10 + $0x8] sm:$0xf]
    %v552 = vld [vmem:[#allocation10 + $0xc] sm:$0xf]
    %v553 = vld [vmem:[#allocation10 + $0x10] sm:$0xf]
    %v554 = vld [vmem:[#allocation10 + $0x14] sm:$0xf]
    %v555 = vld [vmem:[#allocation10 + $0x18] sm:$0xf]
    %v556 = vld [vmem:[#allocation10 + $0x1c] sm:$0xf]
    %v557 = vld [vmem:[#allocation10 + $0x20] sm:$0xf]
    %v558 = vld [vmem:[#allocation10 + $0x24] sm:$0xf]
    %v559 = vld [vmem:[#allocation10 + $0x28] sm:$0xf]
    %v560 = vld [vmem:[#allocation10 + $0x2c] sm:$0xf]
    %v561 = vld [vmem:[#allocation10 + $0x30] sm:$0xf]
    %v562 = vld [vmem:[#allocation10 + $0x34] sm:$0xf]
    %v563 = vld [vmem:[#allocation10 + $0x38] sm:$0xf]
    %v564 = vld [vmem:[#allocation10 + $0x3c] sm:$0xf]
    %v565 = vld [vmem:[%s6] sm:$0x1]
    %v567 = vlaneseq
    %v568 = vshrl.u32 %v567, 7
    %v569 = vsub.s32 0, %v568
    %v570 = vrot.slane %v565, %v569
    %v588 = vunpack.c.l.b16 %v549
    %v589 = vunpack.c.l.b16 %v550
    %v590 = vunpack.c.l.b16 %v551
    %v591 = vunpack.c.l.b16 %v552
    %v592 = vunpack.c.l.b16 %v553
    %v593 = vunpack.c.l.b16 %v554
    %v594 = vunpack.c.l.b16 %v555
    %v595 = vunpack.c.l.b16 %v556
    %v596 = vunpack.c.l.b16 %v557
    %v597 = vunpack.c.l.b16 %v558
    %v598 = vunpack.c.l.b16 %v559
    %v599 = vunpack.c.l.b16 %v560
    %v600 = vunpack.c.l.b16 %v561
    %v601 = vunpack.c.l.b16 %v562
    %v602 = vunpack.c.l.b16 %v563
    %v603 = vunpack.c.l.b16 %v564
    %v604 = vpack.c.b16 %v589, %v588
    %v605 = vpack.c.b16 %v591, %v590
    %v606 = vpack.c.b16 %v593, %v592
    %v607 = vpack.c.b16 %v595, %v594
    %v608 = vpack.c.b16 %v597, %v596
    %v609 = vpack.c.b16 %v599, %v598
    %v610 = vpack.c.b16 %v601, %v600
    %v611 = vpack.c.b16 %v603, %v602
    %620 = vmatprep.subr.bf16.mxu0 0
    %621 = vmatpush1.bf16.msra.mxu0 %v604
    %622 = vmatprep.subr.bf16.mxu0 0
    %623 = vmatpush1.bf16.msra.mxu0 %v605
    %624 = vmatprep.subr.bf16.mxu0 0
    %625 = vmatpush1.bf16.msra.mxu0 %v606
    %626 = vmatprep.subr.bf16.mxu0 0
    %627 = vmatpush1.bf16.msra.mxu0 %v607
    %628 = vmatprep.subr.bf16.mxu0 0
    %629 = vmatpush1.bf16.msra.mxu0 %v608
    %630 = vmatprep.subr.bf16.mxu0 0
    %631 = vmatpush1.bf16.msra.mxu0 %v609
    %632 = vmatprep.subr.bf16.mxu0 0
    %633 = vmatpush1.bf16.msra.mxu0 %v610
    %634 = vmatprep.subr.bf16.mxu0 0
    %635 = vmatpush1.bf16.msra.mxu0 %v611
    %636 = vmatprep.subr.bf16.mxu0 0
    %637 = vmatpush1.bf16.msra.mxu0 0
    %638 = vmatprep.subr.bf16.mxu0 0
    %639 = vmatpush1.bf16.msra.mxu0 0
    %640 = vmatprep.subr.bf16.mxu0 0
    %641 = vmatpush1.bf16.msra.mxu0 0
    %642 = vmatprep.subr.bf16.mxu0 0
    %643 = vmatpush1.bf16.msra.mxu0 0
    %644 = vmatprep.subr.bf16.mxu0 0
    %645 = vmatpush1.bf16.msra.mxu0 0
    %646 = vmatprep.subr.bf16.mxu0 0
    %647 = vmatpush1.bf16.msra.mxu0 0
    %648 = vmatprep.subr.bf16.mxu0 0
    %649 = vmatpush1.bf16.msra.mxu0 0
    %650 = vmatprep.subr.bf16.mxu0 0
    %651 = vmatpush1.bf16.msra.mxu0 0
    %652 = vmatprep.mubr.bf16.mxu0 0
    %653 = vmatmul.mubr.bf16.gmra.mrb[0].mxu0 %v548
    %v654 = vpop.f32.mrb[0].mxu0
    %v655 = vadd.f32 %v570, %v654
    %v656 = vpop.f32.mrb[0].mxu0
    %v657 = vpop.f32.mrb[0].mxu0
    %v658 = vpop.f32.mrb[0].mxu0
    %659 = vdwg.mxu0
    %v660 = vand.u32 2147483647, %v655
    %v661 = vadd.f32 %v660, 1.0
    %v662 = vrcp.pop %v661
    %v663 = vmul.f32 %v655, %v662
    %664 = vst [vmem:[#allocation11] sm:$0xff] %v663
    // Predicated region
    $region50: #{tpu_custom_call.1} parent=1 // pred_check
      _
    $region51: #{tpu_custom_call.1} parent=1 // pred_check_branch
      %666 = sbr.rel (0) target = $region53
    $region52: #{tpu_custom_call.1} parent=1 // pred_region
      %s668 = ssub.s32 128, 128
      %669 = vsyncadd [#allocation4], %s668
      %s671 = sshll.u32 [#allocation11], 4
      %s672 = int_to_ptr.vmem [resolvable:$true] %s671
      %674 = dma.vmem_to_hbm [thread:$0]  %s672, 128, %s7, [#allocation4]
    $region53: #{tpu_custom_call.1} parent=1 // pred_fallthru
      _
    // Predicated region
    $region54: #{tpu_custom_call.1} parent=1 // pred_check
      _
    $region55: #{tpu_custom_call.1} parent=1 // pred_check_branch
      %676 = sbr.rel (0) target = $region57
    $region56: #{tpu_custom_call.1} parent=1 // pred_region
      %677 = dma.done [#allocation4], 128
    $region57: #{tpu_custom_call.1} parent=1 // pred_fallthru
      _
    %678 = vsyncpa [#allocation3], 1
    %679 = vsyncpa [#allocation6], 1
    %680 = vsyncpa [#allocation9], 1
    %681 = vsyncpa [#allocation4], 1

</llo_original>
